<compile_context>
chip_gen: v6e
topology: v6e:2x2x1
jax: 0.10.0
libtpu: 0.0.40
codegen_flags: <defaults>
</compile_context>

<pallas_src>
import functools

import jax
import jax.numpy as jnp
from jax.experimental import pallas as pl
from jax.experimental.pallas import tpu as pltpu

LANES = 128
SUBLANES = 8
MAX_TILE_R = 1024  # rows per block; 1024x128xf32 = 512 KiB per input block


def _round_up(a, b):
    return ((a + b - 1) // b) * b


def _stable_bce_with_logits(x, t):
    # PyTorch's numerically stable BCEWithLogits:
    #   loss = max(x, 0) - x*t + log(1 + exp(-|x|))
    return jnp.maximum(x, 0.0) - x * t + jnp.log1p(jnp.exp(-jnp.abs(x)))


def _tail_mask(loss, n, tile_r):
    """Zero out elements whose global flat index >= n (pad / OOB rows)."""
    i = pl.program_id(0)
    row = jax.lax.broadcasted_iota(jnp.int32, (tile_r, LANES), 0)
    col = jax.lax.broadcasted_iota(jnp.int32, (tile_r, LANES), 1)
    flat = (i * tile_r + row) * LANES + col
    return jnp.where(flat < n, loss, 0.0)


def _partial_reduce(loss, tile_r):
    """(tile_r,128) -> (8,128) by elementwise-adding tile_r/8 vregs (VPU only)."""
    return jnp.sum(loss.reshape(tile_r // SUBLANES, SUBLANES, LANES), axis=0)


def _bce_partials_kernel(x_ref, t_ref, out_ref, *, n, tile_r):
    """Unweighted path: no weight stream at all."""
    x = x_ref[...].astype(jnp.float32)
    t = t_ref[...].astype(jnp.float32)
    loss = _stable_bce_with_logits(x, t)
    loss = _tail_mask(loss, n, tile_r)
    out_ref[...] = _partial_reduce(loss, tile_r)


def _bce_partials_kernel_weighted(x_ref, t_ref, idx_ref, wk_ref, out_ref, *,
                                  n, tile_r, n_classes):
    """Weighted path: in-kernel class-weight lookup from a tiny SMEM table."""
    x = x_ref[...].astype(jnp.float32)
    t = t_ref[...].astype(jnp.float32)
    loss = _stable_bce_with_logits(x, t)

    idx = idx_ref[...]
    w = jnp.zeros_like(loss)
    for k in range(n_classes):            # static, small table -> select chain
        w = jnp.where(idx == k, wk_ref[k], w)
    loss = loss * w

    loss = _tail_mask(loss, n, tile_r)
    out_ref[...] = _partial_reduce(loss, tile_r)


@jax.jit
def bce_loss(logits, targets, weights=None, weights_key=None):
    """Equivalent of BCELoss.forward(logits, targets, weights) from the module.

    logits:  (N, 1) float (any float dtype; cast to f32 inside the kernel)
    targets: any shape with N elements (reshaped to (-1, 1), cast to float)
    weights: optional integer class-id array broadcastable with the loss shape;
             weights_key[weights] gives per-element multiplicative weights.
    """
    # targets.float().reshape(-1, 1) + BCEWithLogitsLoss broadcasting semantics.
    t = targets
    if not jnp.issubdtype(t.dtype, jnp.floating):
        t = t.astype(jnp.float32)
    t = t.reshape(-1, 1)

    x = logits
    loss_shape = jnp.broadcast_shapes(x.shape, t.shape)
    x = jnp.broadcast_to(x, loss_shape).reshape(-1)
    t = jnp.broadcast_to(t, loss_shape).reshape(-1)
    n = x.shape[0]  # static

    weighted = weights is not None
    if weighted:
        idx = jnp.broadcast_to(weights, loss_shape).reshape(-1).astype(jnp.int32)

    # Pad only if needed, and only to a multiple of 8*128 so the flat vector
    # views as whole vreg rows; padded elements are masked in-kernel against n.
    n_slab = _round_up(n, SUBLANES * LANES)
    pad = n_slab - n
    if pad:
        x = jnp.pad(x, (0, pad))
        t = jnp.pad(t, (0, pad))
        if weighted:
            idx = jnp.pad(idx, (0, pad))

    rows = n_slab // LANES
    tile_r = min(MAX_TILE_R, rows)        # both are multiples of 8
    grid = pl.cdiv(rows, tile_r)

    x2 = x.reshape(rows, LANES)
    t2 = t.reshape(rows, LANES)

    data_spec = pl.BlockSpec((tile_r, LANES), lambda i: (i, 0))
    out_spec = pl.BlockSpec((SUBLANES, LANES), lambda i: (i, 0))
    out_shape = jax.ShapeDtypeStruct((grid * SUBLANES, LANES), jnp.float32)
    cparams = pltpu.CompilerParams(dimension_semantics=("parallel",))

    if weighted:
        idx2 = idx.reshape(rows, LANES)
        wk = weights_key.astype(jnp.float32).reshape(-1)
        kernel = functools.partial(
            _bce_partials_kernel_weighted,
            n=n, tile_r=tile_r, n_classes=wk.shape[0])
        partials = pl.pallas_call(
            kernel,
            out_shape=out_shape,
            grid=(grid,),
            in_specs=[data_spec, data_spec, data_spec,
                      pl.BlockSpec(memory_space=pltpu.MemorySpace.SMEM)],
            out_specs=out_spec,
            compiler_params=cparams,
        )(x2, t2, idx2, wk)
    else:
        kernel = functools.partial(_bce_partials_kernel, n=n, tile_r=tile_r)
        partials = pl.pallas_call(
            kernel,
            out_shape=out_shape,
            grid=(grid,),
            in_specs=[data_spec, data_spec],
            out_specs=out_spec,
            compiler_params=cparams,
        )(x2, t2)

    # Tiny final reduction over (grid*8, 128) partials, then mean over N.
    return jnp.sum(partials) / jnp.float32(n)


def _reference(logits, targets, weights=None, weights_key=None):
    x = logits.astype(jnp.float32)
    t = targets.astype(jnp.float32).reshape(-1, 1)
    loss = jnp.maximum(x, 0.0) - x * t + jnp.log1p(jnp.exp(-jnp.abs(x)))
    if weights is not None:
        loss = loss * weights_key[weights].astype(jnp.float32)
    return loss.mean()


if __name__ == "__main__":
    key = jax.random.PRNGKey(0)
    k1, k2, k3 = jax.random.split(key, 3)

    N = 512
    logits = jax.random.normal(k1, (N, 1), dtype=jnp.float32)
    targets = (jax.random.uniform(k2, (N,)) > 0.5).astype(jnp.float32)

    # Deterministic class-weight table (weights_key) and per-element class ids.
    weights_key = jnp.array([0.5, 2.0], dtype=jnp.float32)
    weight_ids = jax.random.randint(k3, (N, 1), 0, 2)

    # Unweighted path (weights=None)
    out_unw = jax.block_until_ready(bce_loss(logits, targets))
    ref_unw = _reference(logits, targets)
    assert jnp.allclose(out_unw, ref_unw, rtol=1e-5, atol=1e-5), (out_unw, ref_unw)

    # Weighted path
    out_w = jax.block_until_ready(
        bce_loss(logits, targets, weights=weight_ids, weights_key=weights_key)
    )
    ref_w = _reference(logits, targets, weights=weight_ids, weights_key=weights_key)
    assert jnp.allclose(out_w, ref_w, rtol=1e-5, atol=1e-5), (out_w, ref_w)

    print("KERNEL_OK")
</pallas_src>

<mosaic_0001>
module attributes {stable_mosaic.version = 11 : i64} {
  func.func @_bce_partials_kernel(%arg0: i32, %arg1: memref<8x128xf32, #tpu.memory_space<vmem>>, %arg2: memref<8x128xf32, #tpu.memory_space<vmem>>, %arg3: memref<8x128xf32, #tpu.memory_space<vmem>>) attributes {dimension_semantics = [#tpu.dimension_semantics<parallel>], iteration_bounds = array<i64: 1>, scalar_prefetch = 0 : i64, scratch_operands = 0 : i64, tpu.core_type = #tpu.core_type<tc>, window_params = [{transform_indices = @transform_0, window_bounds = array<i64: 8, 128>}, {transform_indices = @transform_1, window_bounds = array<i64: 8, 128>}, {transform_indices = @transform_2, window_bounds = array<i64: 8, 128>}]} {
    %c0 = arith.constant 0 : index
    %c0_0 = arith.constant 0 : index
    %0 = vector.load %arg1[%c0, %c0_0] : memref<8x128xf32, #tpu.memory_space<vmem>>, vector<8x128xf32>
    %c0_1 = arith.constant 0 : index
    %c0_2 = arith.constant 0 : index
    %1 = vector.load %arg2[%c0_1, %c0_2] : memref<8x128xf32, #tpu.memory_space<vmem>>, vector<8x128xf32>
    %cst = arith.constant 0.000000e+00 : f32
    %2 = vector.broadcast %cst : f32 to vector<8x128xf32>
    %3 = arith.maximumf %0, %2 : vector<8x128xf32>
    %4 = arith.mulf %0, %1 : vector<8x128xf32>
    %5 = arith.subf %3, %4 : vector<8x128xf32>
    %6 = math.absf %0 : vector<8x128xf32>
    %cst_3 = arith.constant 0.000000e+00 : f32
    %7 = vector.broadcast %cst_3 : f32 to vector<8x128xf32>
    %8 = arith.subf %7, %6 : vector<8x128xf32>
    %9 = math.exp %8 : vector<8x128xf32>
    %10 = math.log1p %9 : vector<8x128xf32>
    %11 = arith.addf %5, %10 : vector<8x128xf32>
    %12 = tpu.iota {dimensions = array<i32: 0>} : vector<8x128xi32>
    %13 = tpu.iota {dimensions = array<i32: 1>} : vector<8x128xi32>
    %c8_i32 = arith.constant 8 : i32
    %14 = arith.muli %arg0, %c8_i32 : i32
    %15 = vector.broadcast %14 : i32 to vector<8x128xi32>
    %16 = arith.addi %15, %12 : vector<8x128xi32>
    %c128_i32 = arith.constant 128 : i32
    %17 = vector.broadcast %c128_i32 : i32 to vector<8x128xi32>
    %18 = arith.muli %16, %17 : vector<8x128xi32>
    %19 = arith.addi %18, %13 : vector<8x128xi32>
    %c512_i32 = arith.constant 512 : i32
    %20 = vector.broadcast %c512_i32 : i32 to vector<8x128xi32>
    %21 = arith.cmpi slt, %19, %20 : vector<8x128xi32>
    %cst_4 = arith.constant 0.000000e+00 : f32
    %22 = vector.broadcast %cst_4 : f32 to vector<8x128xf32>
    %23 = arith.select %21, %11, %22 : vector<8x128xi1>, vector<8x128xf32>
    %24 = vector.shape_cast %23 : vector<8x128xf32> to vector<1x8x128xf32>
    %cst_5 = arith.constant dense<0.000000e+00> : vector<8x128xf32>
    %25 = vector.multi_reduction <add>, %24, %cst_5 [0] : vector<1x8x128xf32> to vector<8x128xf32>
    %c0_6 = arith.constant 0 : index
    %c0_7 = arith.constant 0 : index
    %26 = vector.load %arg3[%c0_6, %c0_7] : memref<8x128xf32, #tpu.memory_space<vmem>>, vector<8x128xf32>
    tpu.vector_store %arg3[%c0_6, %c0_7], %25 {strides = array<i32>} : memref<8x128xf32, #tpu.memory_space<vmem>>, vector<8x128xf32>,
    return
  }
  func.func @transform_0(%arg0: i32) -> (i32, i32) {
    %c0_i32 = arith.constant 0 : i32
    %c0_i32_0 = arith.constant 0 : i32
    return %arg0, %c0_i32 : i32, i32
  }
  func.func @transform_1(%arg0: i32) -> (i32, i32) {
    %c0_i32 = arith.constant 0 : i32
    %c0_i32_0 = arith.constant 0 : i32
    return %arg0, %c0_i32 : i32, i32
  }
  func.func @transform_2(%arg0: i32) -> (i32, i32) {
    %c0_i32 = arith.constant 0 : i32
    %c0_i32_0 = arith.constant 0 : i32
    return %arg0, %c0_i32 : i32, i32
  }
}

</mosaic_0001>

<llo_original>
// kernel: bce_loss.1
$region0: #{bce_loss.1}
  #allocation0 [shape = 'u32[]', space=smem, size = 0x4, offset = 0x4, fixed_abs, tag = 'smem constant byte address 0x4 - core index']
  #allocation1 [shape = 'u32[144,128]{1,0:T(1,128)}', space=vmem, size = 0x12000, scoped, tag = 'internal scratch']
  %s0 = inlined_call_operand.vmem [shape: f32[8,128], index: 0, kind: input, shape index: {}]
  %s1 = inlined_call_operand.vmem [shape: f32[8,128], index: 1, kind: input, shape index: {}]
  %s2 = inlined_call_operand.vmem [shape: f32[8,128], index: 2, kind: output, shape index: {}]
  %s3 = sld [smem:[#allocation0]]
  $region18: #{bce_loss.1} parent=0
    _
  %s5 = ssub.s32 1, %s3
  %s6 = scalar_select 0, %s5, %s3
  // Predicated region
  $region2: #{bce_loss.1} parent=0 // pred_check
    _
  $region3: #{bce_loss.1} parent=0 // pred_check_branch
    %8 = sbr.rel (0) target = $region5
  $region4: #{bce_loss.1} parent=0 // pred_region
    _
  $region5: #{bce_loss.1} parent=0 // pred_fallthru
    _
  // Predicated region
  $region6: #{bce_loss.1} parent=0 // pred_check
    _
  $region7: #{bce_loss.1} parent=0 // pred_check_branch
    %10 = sbr.rel (0) target = $region9
  $region8: #{bce_loss.1} parent=0 // pred_region
    _
  $region9: #{bce_loss.1} parent=0 // pred_fallthru
    _
  %v11 = vld [vmem:[%s0] sm:$0xff]
  %v12 = vld [vmem:[%s1] sm:$0xff]
  %v13 = vmax.f32 %v11, 0.0
  %v14 = vmul.f32 %v11, %v12
  %v15 = vsub.f32 %v13, %v14
  %v16 = vand.u32 2147483647, %v11
  %v17 = vsub.f32 0.0, %v16
  %v18 = vmul.f32 %v17, 1.442695
  %v19 = vpow.pop %v18
  %v20 = vadd.f32 %v19, 1.0
  %v21 = vlog2.pop %v20
  %v22 = vmul.f32 %v21, 0.6931472
  %v23 = vmul.f32 -0.5, %v19
  %v24 = vadd.f32 %v23, 1.0
  %v25 = vmul.f32 %v24, %v19
  %v26 = vand.u32 2147483647, %v19
  %vm27 = vcmp.lt.f32.partialorder %v26, 0.0004427343
  %v28 = vsel %vm27, %v25, %v22
  %v29 = vadd.f32 %v15, %v28
  %v30 = vlaneseq
  %v31 = vshrl.u32 %v30, 7
  %v32 = vlaneseq
  %v33 = vand.u32 %v32, 127
  %s34 = smul.u32 0, 8
  %v35 = vstv %s34
  %v36 = vadd.s32 %v35, %v31
  %v37 = vmul.u32 %v36, 128
  %v38 = vadd.s32 %v37, %v33
  %vm39 = vcmp.lt.s32.totalorder %v38, 512
  %v40 = vsel %vm39, %v29, 0.0
  %v41 = vadd.f32 %v40, 0.0
  %42 = vst [vmem:[%s2] sm:$0xff] %v41
  // Predicated region
  $region10: #{bce_loss.1} parent=0 // pred_check
    _
  $region11: #{bce_loss.1} parent=0 // pred_check_branch
    %44 = sbr.rel (0) target = $region13
  $region12: #{bce_loss.1} parent=0 // pred_region
    _
  $region13: #{bce_loss.1} parent=0 // pred_fallthru
    _
  // Predicated region
  $region14: #{bce_loss.1} parent=0 // pred_check
    _
  $region15: #{bce_loss.1} parent=0 // pred_check_branch
    %46 = sbr.rel (0) target = $region17
  $region16: #{bce_loss.1} parent=0 // pred_region
    _
  $region17: #{bce_loss.1} parent=0 // pred_fallthru
    _

</llo_original>
